<compile_context>
chip_gen: v5e
topology: v5e:2x2
jax: 0.10.0
libtpu: 0.0.40
codegen_flags: <defaults>
</compile_context>

<pallas_src>
import functools

import jax
import jax.numpy as jnp
from jax.experimental import pallas as pl
from jax.experimental.pallas import tpu as pltpu


def _round_up(v, m):
    return (v + m - 1) // m * m


def _stats_kernel(bounds_ref,                     # SMEM scalar-prefetch: (G+1,) int32 row offsets
                  x_ref, gamma_ref, beta_ref, nvec_ref,   # VMEM inputs
                  scale_ref, shift_ref,           # VMEM outputs (resident accumulators)
                  *, eps):
    t = pl.program_id(0)
    tm = x_ref.shape[0]
    num_graphs = scale_ref.shape[0]

    @pl.when(t == 0)
    def _init():
        scale_ref[...] = jnp.zeros_like(scale_ref)   # running per-graph sum(x)
        shift_ref[...] = jnp.zeros_like(shift_ref)   # running per-graph sum(x^2)

    x = x_ref[...].astype(jnp.float32)               # (TM, F), cast in-register
    rows = t * tm + jax.lax.broadcasted_iota(jnp.int32, (tm, 1), 0)

    # Per-graph masked accumulation.  bounds[G] == N, so padded rows of the last
    # (partial) tile are masked out automatically.  xg*xg (not xg*x) so garbage
    # in the OOB part of the tile can never poison the sums (0 * NaN hazard).
    for g in range(num_graphs):
        m = jnp.logical_and(rows >= bounds_ref[g], rows < bounds_ref[g + 1])
        xg = jnp.where(m, x, 0.0)
        scale_ref[g:g + 1, :] += jnp.sum(xg, axis=0, keepdims=True)
        shift_ref[g:g + 1, :] += jnp.sum(xg * xg, axis=0, keepdims=True)

    @pl.when(t == pl.num_programs(0) - 1)
    def _finalize():
        n = nvec_ref[...]                             # (G, 1) f32 node counts
        s = scale_ref[...]                            # sum(x)
        q = shift_ref[...]                            # sum(x^2)
        mean = s / n
        # torch.std default: unbiased (n-1).  n == 1 -> NaN, same as torch.
        var = (q - n * mean * mean) / (n - 1.0)
        std = jnp.sqrt(var)
        # Tiny (G, F) block, computed once per call -> exact reciprocal is free.
        inv = pl.reciprocal(std + eps, approx=False)
        scale = gamma_ref[...] * inv                  # gamma folded into the scale row
        scale_ref[...] = scale
        shift_ref[...] = beta_ref[...] - mean * scale


def _norm_kernel(bounds_ref,                      # SMEM scalar-prefetch: (G+1,) int32
                 x_ref, scale_ref, shift_ref,     # VMEM inputs
                 out_ref):                        # VMEM output tile
    t = pl.program_id(0)
    tm, f = x_ref.shape
    num_graphs = scale_ref.shape[0]

    x = x_ref[...].astype(jnp.float32)
    rows = t * tm + jax.lax.broadcasted_iota(jnp.int32, (tm, 1), 0)

    sc = scale_ref[...]                               # (G, F)
    sh = shift_ref[...]
    scale_rows = jnp.zeros((tm, f), jnp.float32)
    shift_rows = jnp.zeros((tm, f), jnp.float32)
    for g in range(num_graphs):
        m = jnp.logical_and(rows >= bounds_ref[g], rows < bounds_ref[g + 1])
        scale_rows = jnp.where(m, sc[g:g + 1, :], scale_rows)
        shift_rows = jnp.where(m, sh[g:g + 1, :], shift_rows)

    # Single FMA per element: out = x * (gamma/(std+eps)) + (beta - mean*scale).
    out_ref[...] = (x * scale_rows + shift_rows).astype(out_ref.dtype)


def graphnorm_no_mean_scale(x, counts, gamma, beta, *, eps=1e-5, block_rows=512):
    """x: (N, F); counts: (G,) per-graph node counts (sum == N); gamma/beta: (F,)."""
    N, F = x.shape
    counts = jnp.asarray(counts, dtype=jnp.int32)
    G = int(counts.shape[0])

    # Segment bounds (scalar-prefetched to SMEM) and per-graph counts as f32.
    bounds = jnp.concatenate([jnp.zeros((1,), jnp.int32), jnp.cumsum(counts)])  # (G+1,)
    nvec = counts.astype(jnp.float32).reshape(G, 1)
    gamma2 = jnp.asarray(gamma, jnp.float32).reshape(1, F)
    beta2 = jnp.asarray(beta, jnp.float32).reshape(1, F)

    # Fixed-size row tiles (sublane-aligned); F stays native (full-dim block).
    tm = max(8, min(_round_up(int(block_rows), 8), _round_up(N, 8)))
    num_tiles = pl.cdiv(N, tm)

    # ---- Pass 1: per-graph stats -> (scale, shift), accumulated across row tiles.
    scale, shift = pl.pallas_call(
        functools.partial(_stats_kernel, eps=eps),
        out_shape=(jax.ShapeDtypeStruct((G, F), jnp.float32),
                   jax.ShapeDtypeStruct((G, F), jnp.float32)),
        grid_spec=pltpu.PrefetchScalarGridSpec(
            num_scalar_prefetch=1,                       # bounds -> SMEM
            grid=(num_tiles,),
            in_specs=[
                pl.BlockSpec((tm, F), lambda t, b: (t, 0)),   # x row tile
                pl.BlockSpec((1, F), lambda t, b: (0, 0)),    # gamma
                pl.BlockSpec((1, F), lambda t, b: (0, 0)),    # beta
                pl.BlockSpec((G, 1), lambda t, b: (0, 0)),    # counts (f32)
            ],
            out_specs=(pl.BlockSpec((G, F), lambda t, b: (0, 0)),   # resident accumulators
                       pl.BlockSpec((G, F), lambda t, b: (0, 0))),
        ),
        compiler_params=pltpu.CompilerParams(
            dimension_semantics=("arbitrary",)),        # reduction over row tiles
    )(bounds, x, gamma2, beta2, nvec)

    # ---- Pass 2: normalize row tiles (independent -> megacore-shardable on v7x).
    out = pl.pallas_call(
        _norm_kernel,
        out_shape=jax.ShapeDtypeStruct((N, F), x.dtype),
        grid_spec=pltpu.PrefetchScalarGridSpec(
            num_scalar_prefetch=1,
            grid=(num_tiles,),
            in_specs=[
                pl.BlockSpec((tm, F), lambda t, b: (t, 0)),   # x row tile
                pl.BlockSpec((G, F), lambda t, b: (0, 0)),    # per-graph scale
                pl.BlockSpec((G, F), lambda t, b: (0, 0)),    # per-graph shift
            ],
            out_specs=pl.BlockSpec((tm, F), lambda t, b: (t, 0)),
        ),
        compiler_params=pltpu.CompilerParams(
            dimension_semantics=("parallel",)),
    )(bounds, x, scale, shift)

    return out


def _reference(x, counts_list, gamma, beta, eps=1e-5):
    """Pure-JAX reference mirroring the PyTorch forward (torch.std = unbiased)."""
    outs = []
    start = 0
    for n in counts_list:
        seg = x[start:start + n]
        mean = seg.mean(axis=0, keepdims=True)
        std = seg.std(axis=0, keepdims=True, ddof=1)
        outs.append((seg - mean) / (std + eps))
        start += n
    normed = jnp.concatenate(outs, axis=0)
    return gamma[None, :] * normed + beta[None, :]


if __name__ == "__main__":
    num_features = 32
    key = jax.random.PRNGKey(0)

    # (counts, use module-init params (ones/zeros), block_rows)
    cases = [
        ([3, 5, 8], True, 512),          # module-init gamma/beta
        ([4, 9, 3], False, 512),         # non-trivial affine params (tests folding)
        ([5, 60, 7, 30], False, 32),     # graphs spanning row tiles + partial last tile
    ]

    for counts_list, default_params, block_rows in cases:
        counts = jnp.array(counts_list, dtype=jnp.int32)
        n_total = int(sum(counts_list))

        key, kx, kg, kb = jax.random.split(key, 4)
        x = jax.random.normal(kx, (n_total, num_features), dtype=jnp.float32)
        if default_params:
            gamma = jnp.ones((num_features,), dtype=jnp.float32)   # nn.Parameter(ones)
            beta = jnp.zeros((num_features,), dtype=jnp.float32)   # nn.Parameter(zeros)
        else:
            gamma = jax.random.normal(kg, (num_features,), dtype=jnp.float32)
            beta = jax.random.normal(kb, (num_features,), dtype=jnp.float32)

        out = graphnorm_no_mean_scale(x, counts, gamma, beta, block_rows=block_rows)
        out = jax.block_until_ready(out)

        ref = _reference(x, counts_list, gamma, beta)
        assert out.shape == ref.shape and out.dtype == ref.dtype
        assert jnp.allclose(out, ref, atol=2e-5, rtol=2e-5), "mismatch vs reference"

    print("KERNEL_OK")
</pallas_src>

<mosaic_0001>
module attributes {stable_mosaic.version = 11 : i64} {
  func.func @_stats_kernel(%arg0: i32, %arg1: memref<4xi32, #tpu.memory_space<smem>>, %arg2: memref<16x32xf32, #tpu.memory_space<vmem>>, %arg3: memref<1x32xf32, #tpu.memory_space<vmem>>, %arg4: memref<1x32xf32, #tpu.memory_space<vmem>>, %arg5: memref<3x1xf32, #tpu.memory_space<vmem>>, %arg6: memref<3x32xf32, #tpu.memory_space<vmem>>, %arg7: memref<3x32xf32, #tpu.memory_space<vmem>>) attributes {dimension_semantics = [#tpu.dimension_semantics<arbitrary>], iteration_bounds = array<i64: 1>, scalar_prefetch = 1 : i64, scratch_operands = 0 : i64, tpu.core_type = #tpu.core_type<tc>, window_params = [{transform_indices = @transform_0, window_bounds = array<i64: 16, 32>}, {pipeline_mode = #tpu.pipeline_mode<synchronous>, transform_indices = @transform_1, window_bounds = array<i64: 1, 32>}, {pipeline_mode = #tpu.pipeline_mode<synchronous>, transform_indices = @transform_2, window_bounds = array<i64: 1, 32>}, {pipeline_mode = #tpu.pipeline_mode<synchronous>, transform_indices = @transform_3, window_bounds = array<i64: 3, 1>}, {pipeline_mode = #tpu.pipeline_mode<synchronous>, transform_indices = @transform_4, window_bounds = array<i64: 3, 32>}, {pipeline_mode = #tpu.pipeline_mode<synchronous>, transform_indices = @transform_5, window_bounds = array<i64: 3, 32>}]} {
    %c0_i32 = arith.constant 0 : i32
    %0 = arith.cmpi eq, %arg0, %c0_i32 : i32
    %1 = arith.extui %0 : i1 to i32
    %c0_i32_0 = arith.constant 0 : i32
    %2 = arith.cmpi ne, %1, %c0_i32_0 : i32
    scf.if %2 {
      %cst_39 = arith.constant 0.000000e+00 : f32
      %77 = vector.broadcast %cst_39 : f32 to vector<3x32xf32>
      %c0_40 = arith.constant 0 : index
      %c0_41 = arith.constant 0 : index
      %78 = vector.load %arg6[%c0_40, %c0_41] : memref<3x32xf32, #tpu.memory_space<vmem>>, vector<3x32xf32>
      tpu.vector_store %arg6[%c0_40, %c0_41], %77 {strides = array<i32>} : memref<3x32xf32, #tpu.memory_space<vmem>>, vector<3x32xf32>,
      %cst_42 = arith.constant 0.000000e+00 : f32
      %79 = vector.broadcast %cst_42 : f32 to vector<3x32xf32>
      %c0_43 = arith.constant 0 : index
      %c0_44 = arith.constant 0 : index
      %80 = vector.load %arg7[%c0_43, %c0_44] : memref<3x32xf32, #tpu.memory_space<vmem>>, vector<3x32xf32>
      tpu.vector_store %arg7[%c0_43, %c0_44], %79 {strides = array<i32>} : memref<3x32xf32, #tpu.memory_space<vmem>>, vector<3x32xf32>,
    } else {
    }
    %c0 = arith.constant 0 : index
    %c0_1 = arith.constant 0 : index
    %3 = vector.load %arg2[%c0, %c0_1] : memref<16x32xf32, #tpu.memory_space<vmem>>, vector<16x32xf32>
    %c16_i32 = arith.constant 16 : i32
    %4 = arith.muli %arg0, %c16_i32 : i32
    %5 = tpu.iota {dimensions = array<i32: 0>} : vector<16x1xi32>
    %6 = vector.broadcast %4 : i32 to vector<16x1xi32>
    %7 = arith.addi %6, %5 : vector<16x1xi32>
    %c0_2 = arith.constant 0 : index
    %8 = memref.load %arg1[%c0_2] : memref<4xi32, #tpu.memory_space<smem>>
    %9 = vector.broadcast %8 : i32 to vector<16x1xi32>
    %10 = arith.cmpi sge, %7, %9 : vector<16x1xi32>
    %c1 = arith.constant 1 : index
    %11 = memref.load %arg1[%c1] : memref<4xi32, #tpu.memory_space<smem>>
    %12 = vector.broadcast %11 : i32 to vector<16x1xi32>
    %13 = arith.cmpi slt, %7, %12 : vector<16x1xi32>
    %14 = arith.andi %10, %13 : vector<16x1xi1>
    %cst = arith.constant 0.000000e+00 : f32
    %15 = vector.shape_cast %14 : vector<16x1xi1> to vector<16x1xi1>
    %16 = vector.broadcast %15 : vector<16x1xi1> to vector<16x32xi1>
    %17 = vector.broadcast %cst : f32 to vector<16x32xf32>
    %18 = arith.select %16, %3, %17 : vector<16x32xi1>, vector<16x32xf32>
    %c0_3 = arith.constant 0 : index
    %c0_4 = arith.constant 0 : index
    %19 = vector.load %arg6[%c0_3, %c0_4] : memref<3x32xf32, #tpu.memory_space<vmem>>, vector<1x32xf32>
    %cst_5 = arith.constant dense<0.000000e+00> : vector<32xf32>
    %20 = vector.multi_reduction <add>, %18, %cst_5 [0] : vector<16x32xf32> to vector<32xf32>
    %21 = vector.shape_cast %20 : vector<32xf32> to vector<1x32xf32>
    %22 = arith.addf %19, %21 : vector<1x32xf32>
    %c0_6 = arith.constant 0 : index
    %c0_7 = arith.constant 0 : index
    %23 = vector.load %arg6[%c0_6, %c0_7] : memref<3x32xf32, #tpu.memory_space<vmem>>, vector<1x32xf32>
    tpu.vector_store %arg6[%c0_6, %c0_7], %22 {strides = array<i32>} : memref<3x32xf32, #tpu.memory_space<vmem>>, vector<1x32xf32>,
    %c0_8 = arith.constant 0 : index
    %c0_9 = arith.constant 0 : index
    %24 = vector.load %arg7[%c0_8, %c0_9] : memref<3x32xf32, #tpu.memory_space<vmem>>, vector<1x32xf32>
    %25 = arith.mulf %18, %18 : vector<16x32xf32>
    %cst_10 = arith.constant dense<0.000000e+00> : vector<32xf32>
    %26 = vector.multi_reduction <add>, %25, %cst_10 [0] : vector<16x32xf32> to vector<32xf32>
    %27 = vector.shape_cast %26 : vector<32xf32> to vector<1x32xf32>
    %28 = arith.addf %24, %27 : vector<1x32xf32>
    %c0_11 = arith.constant 0 : index
    %c0_12 = arith.constant 0 : index
    %29 = vector.load %arg7[%c0_11, %c0_12] : memref<3x32xf32, #tpu.memory_space<vmem>>, vector<1x32xf32>
    tpu.vector_store %arg7[%c0_11, %c0_12], %28 {strides = array<i32>} : memref<3x32xf32, #tpu.memory_space<vmem>>, vector<1x32xf32>,
    %c1_13 = arith.constant 1 : index
    %30 = memref.load %arg1[%c1_13] : memref<4xi32, #tpu.memory_space<smem>>
    %31 = vector.broadcast %30 : i32 to vector<16x1xi32>
    %32 = arith.cmpi sge, %7, %31 : vector<16x1xi32>
    %c2 = arith.constant 2 : index
    %33 = memref.load %arg1[%c2] : memref<4xi32, #tpu.memory_space<smem>>
    %34 = vector.broadcast %33 : i32 to vector<16x1xi32>
    %35 = arith.cmpi slt, %7, %34 : vector<16x1xi32>
    %36 = arith.andi %32, %35 : vector<16x1xi1>
    %cst_14 = arith.constant 0.000000e+00 : f32
    %37 = vector.shape_cast %36 : vector<16x1xi1> to vector<16x1xi1>
    %38 = vector.broadcast %37 : vector<16x1xi1> to vector<16x32xi1>
    %39 = vector.broadcast %cst_14 : f32 to vector<16x32xf32>
    %40 = arith.select %38, %3, %39 : vector<16x32xi1>, vector<16x32xf32>
    %c1_15 = arith.constant 1 : index
    %c0_16 = arith.constant 0 : index
    %41 = vector.load %arg6[%c1_15, %c0_16] : memref<3x32xf32, #tpu.memory_space<vmem>>, vector<1x32xf32>
    %cst_17 = arith.constant dense<0.000000e+00> : vector<32xf32>
    %42 = vector.multi_reduction <add>, %40, %cst_17 [0] : vector<16x32xf32> to vector<32xf32>
    %43 = vector.shape_cast %42 : vector<32xf32> to vector<1x32xf32>
    %44 = arith.addf %41, %43 : vector<1x32xf32>
    %c1_18 = arith.constant 1 : index
    %c0_19 = arith.constant 0 : index
    %45 = vector.load %arg6[%c1_18, %c0_19] : memref<3x32xf32, #tpu.memory_space<vmem>>, vector<1x32xf32>
    tpu.vector_store %arg6[%c1_18, %c0_19], %44 {strides = array<i32>} : memref<3x32xf32, #tpu.memory_space<vmem>>, vector<1x32xf32>,
    %c1_20 = arith.constant 1 : index
    %c0_21 = arith.constant 0 : index
    %46 = vector.load %arg7[%c1_20, %c0_21] : memref<3x32xf32, #tpu.memory_space<vmem>>, vector<1x32xf32>
    %47 = arith.mulf %40, %40 : vector<16x32xf32>
    %cst_22 = arith.constant dense<0.000000e+00> : vector<32xf32>
    %48 = vector.multi_reduction <add>, %47, %cst_22 [0] : vector<16x32xf32> to vector<32xf32>
    %49 = vector.shape_cast %48 : vector<32xf32> to vector<1x32xf32>
    %50 = arith.addf %46, %49 : vector<1x32xf32>
    %c1_23 = arith.constant 1 : index
    %c0_24 = arith.constant 0 : index
    %51 = vector.load %arg7[%c1_23, %c0_24] : memref<3x32xf32, #tpu.memory_space<vmem>>, vector<1x32xf32>
    tpu.vector_store %arg7[%c1_23, %c0_24], %50 {strides = array<i32>} : memref<3x32xf32, #tpu.memory_space<vmem>>, vector<1x32xf32>,
    %c2_25 = arith.constant 2 : index
    %52 = memref.load %arg1[%c2_25] : memref<4xi32, #tpu.memory_space<smem>>
    %53 = vector.broadcast %52 : i32 to vector<16x1xi32>
    %54 = arith.cmpi sge, %7, %53 : vector<16x1xi32>
    %c3 = arith.constant 3 : index
    %55 = memref.load %arg1[%c3] : memref<4xi32, #tpu.memory_space<smem>>
    %56 = vector.broadcast %55 : i32 to vector<16x1xi32>
    %57 = arith.cmpi slt, %7, %56 : vector<16x1xi32>
    %58 = arith.andi %54, %57 : vector<16x1xi1>
    %cst_26 = arith.constant 0.000000e+00 : f32
    %59 = vector.shape_cast %58 : vector<16x1xi1> to vector<16x1xi1>
    %60 = vector.broadcast %59 : vector<16x1xi1> to vector<16x32xi1>
    %61 = vector.broadcast %cst_26 : f32 to vector<16x32xf32>
    %62 = arith.select %60, %3, %61 : vector<16x32xi1>, vector<16x32xf32>
    %c2_27 = arith.constant 2 : index
    %c0_28 = arith.constant 0 : index
    %63 = vector.load %arg6[%c2_27, %c0_28] : memref<3x32xf32, #tpu.memory_space<vmem>>, vector<1x32xf32>
    %cst_29 = arith.constant dense<0.000000e+00> : vector<32xf32>
    %64 = vector.multi_reduction <add>, %62, %cst_29 [0] : vector<16x32xf32> to vector<32xf32>
    %65 = vector.shape_cast %64 : vector<32xf32> to vector<1x32xf32>
    %66 = arith.addf %63, %65 : vector<1x32xf32>
    %c2_30 = arith.constant 2 : index
    %c0_31 = arith.constant 0 : index
    %67 = vector.load %arg6[%c2_30, %c0_31] : memref<3x32xf32, #tpu.memory_space<vmem>>, vector<1x32xf32>
    tpu.vector_store %arg6[%c2_30, %c0_31], %66 {strides = array<i32>} : memref<3x32xf32, #tpu.memory_space<vmem>>, vector<1x32xf32>,
    %c2_32 = arith.constant 2 : index
    %c0_33 = arith.constant 0 : index
    %68 = vector.load %arg7[%c2_32, %c0_33] : memref<3x32xf32, #tpu.memory_space<vmem>>, vector<1x32xf32>
    %69 = arith.mulf %62, %62 : vector<16x32xf32>
    %cst_34 = arith.constant dense<0.000000e+00> : vector<32xf32>
    %70 = vector.multi_reduction <add>, %69, %cst_34 [0] : vector<16x32xf32> to vector<32xf32>
    %71 = vector.shape_cast %70 : vector<32xf32> to vector<1x32xf32>
    %72 = arith.addf %68, %71 : vector<1x32xf32>
    %c2_35 = arith.constant 2 : index
    %c0_36 = arith.constant 0 : index
    %73 = vector.load %arg7[%c2_35, %c0_36] : memref<3x32xf32, #tpu.memory_space<vmem>>, vector<1x32xf32>
    tpu.vector_store %arg7[%c2_35, %c0_36], %72 {strides = array<i32>} : memref<3x32xf32, #tpu.memory_space<vmem>>, vector<1x32xf32>,
    %c0_i32_37 = arith.constant 0 : i32
    %74 = arith.cmpi eq, %arg0, %c0_i32_37 : i32
    %75 = arith.extui %74 : i1 to i32
    %c0_i32_38 = arith.constant 0 : i32
    %76 = arith.cmpi ne, %75, %c0_i32_38 : i32
    scf.if %76 {
      %c0_39 = arith.constant 0 : index
      %c0_40 = arith.constant 0 : index
      %77 = vector.load %arg5[%c0_39, %c0_40] : memref<3x1xf32, #tpu.memory_space<vmem>>, vector<3x1xf32>
      %c0_41 = arith.constant 0 : index
      %c0_42 = arith.constant 0 : index
      %78 = vector.load %arg6[%c0_41, %c0_42] : memref<3x32xf32, #tpu.memory_space<vmem>>, vector<3x32xf32>
      %c0_43 = arith.constant 0 : index
      %c0_44 = arith.constant 0 : index
      %79 = vector.load %arg7[%c0_43, %c0_44] : memref<3x32xf32, #tpu.memory_space<vmem>>, vector<3x32xf32>
      %80 = vector.broadcast %77 : vector<3x1xf32> to vector<3x32xf32>
      %81 = arith.divf %78, %80 : vector<3x32xf32>
      %82 = vector.broadcast %77 : vector<3x1xf32> to vector<3x32xf32>
      %83 = arith.mulf %82, %81 : vector<3x32xf32>
      %84 = arith.mulf %83, %81 : vector<3x32xf32>
      %85 = arith.subf %79, %84 : vector<3x32xf32>
      %cst_45 = arith.constant 1.000000e+00 : f32
      %86 = vector.broadcast %cst_45 : f32 to vector<3x1xf32>
      %87 = arith.subf %77, %86 : vector<3x1xf32>
      %88 = vector.broadcast %87 : vector<3x1xf32> to vector<3x32xf32>
      %89 = arith.divf %85, %88 : vector<3x32xf32>
      %90 = math.sqrt %89 : vector<3x32xf32>
      %cst_46 = arith.constant 9.99999974E-6 : f32
      %91 = vector.broadcast %cst_46 : f32 to vector<3x32xf32>
      %92 = arith.addf %90, %91 : vector<3x32xf32>
      %93 = tpu.reciprocal %92 : vector<3x32xf32> -> vector<3x32xf32>
      %c0_47 = arith.constant 0 : index
      %c0_48 = arith.constant 0 : index
      %94 = vector.load %arg3[%c0_47, %c0_48] : memref<1x32xf32, #tpu.memory_space<vmem>>, vector<1x32xf32>
      %95 = vector.broadcast %94 : vector<1x32xf32> to vector<3x32xf32>
      %96 = arith.mulf %95, %93 : vector<3x32xf32>
      %c0_49 = arith.constant 0 : index
      %c0_50 = arith.constant 0 : index
      %97 = vector.load %arg6[%c0_49, %c0_50] : memref<3x32xf32, #tpu.memory_space<vmem>>, vector<3x32xf32>
      tpu.vector_store %arg6[%c0_49, %c0_50], %96 {strides = array<i32>} : memref<3x32xf32, #tpu.memory_space<vmem>>, vector<3x32xf32>,
      %c0_51 = arith.constant 0 : index
      %c0_52 = arith.constant 0 : index
      %98 = vector.load %arg4[%c0_51, %c0_52] : memref<1x32xf32, #tpu.memory_space<vmem>>, vector<1x32xf32>
      %99 = arith.mulf %81, %96 : vector<3x32xf32>
      %100 = vector.broadcast %98 : vector<1x32xf32> to vector<3x32xf32>
      %101 = arith.subf %100, %99 : vector<3x32xf32>
      %c0_53 = arith.constant 0 : index
      %c0_54 = arith.constant 0 : index
      %102 = vector.load %arg7[%c0_53, %c0_54] : memref<3x32xf32, #tpu.memory_space<vmem>>, vector<3x32xf32>
      tpu.vector_store %arg7[%c0_53, %c0_54], %101 {strides = array<i32>} : memref<3x32xf32, #tpu.memory_space<vmem>>, vector<3x32xf32>,
    } else {
    }
    return
  }
  func.func @transform_0(%arg0: i32, %arg1: memref<4xi32, #tpu.memory_space<smem>>) -> (i32, i32) {
    %c0_i32 = arith.constant 0 : i32
    %c0_i32_0 = arith.constant 0 : i32
    return %arg0, %c0_i32 : i32, i32
  }
  func.func @transform_1(%arg0: i32, %arg1: memref<4xi32, #tpu.memory_space<smem>>) -> (i32, i32) {
    %c0_i32 = arith.constant 0 : i32
    %c0_i32_0 = arith.constant 0 : i32
    %c0_i32_1 = arith.constant 0 : i32
    return %c0_i32, %c0_i32_0 : i32, i32
  }
  func.func @transform_2(%arg0: i32, %arg1: memref<4xi32, #tpu.memory_space<smem>>) -> (i32, i32) {
    %c0_i32 = arith.constant 0 : i32
    %c0_i32_0 = arith.constant 0 : i32
    %c0_i32_1 = arith.constant 0 : i32
    return %c0_i32, %c0_i32_0 : i32, i32
  }
  func.func @transform_3(%arg0: i32, %arg1: memref<4xi32, #tpu.memory_space<smem>>) -> (i32, i32) {
    %c0_i32 = arith.constant 0 : i32
    %c0_i32_0 = arith.constant 0 : i32
    %c0_i32_1 = arith.constant 0 : i32
    return %c0_i32, %c0_i32_0 : i32, i32
  }
  func.func @transform_4(%arg0: i32, %arg1: memref<4xi32, #tpu.memory_space<smem>>) -> (i32, i32) {
    %c0_i32 = arith.constant 0 : i32
    %c0_i32_0 = arith.constant 0 : i32
    %c0_i32_1 = arith.constant 0 : i32
    return %c0_i32, %c0_i32_0 : i32, i32
  }
  func.func @transform_5(%arg0: i32, %arg1: memref<4xi32, #tpu.memory_space<smem>>) -> (i32, i32) {
    %c0_i32 = arith.constant 0 : i32
    %c0_i32_0 = arith.constant 0 : i32
    %c0_i32_1 = arith.constant 0 : i32
    return %c0_i32, %c0_i32_0 : i32, i32
  }
}

</mosaic_0001>

<llo_original>
// kernel: tpu_custom_call.1
$region0: #{tpu_custom_call.1}
  #allocation0 [shape = 'u32[]', space=smem, size = 0x4, offset = 0x4, fixed_abs, tag = 'smem constant byte address 0x4 - core index']
  #allocation1 [shape = 'u32[72,128]{1,0:T(1,128)}', space=vmem, size = 0x9000, scoped, tag = 'internal scratch']
  #allocation2 [shape = 's32[1]{0}', space=sflag, size = 0x4, scoped, tag = 'scoped memory for tpu_custom_call.1']
  #allocation3 [shape = 'u8[512]{0}', space=smem, size = 0x200, scoped, tag = 'prefetched SMEM operand 0']
  %s0 = inlined_call_operand.vmem [shape: s32[4], index: 0, kind: input, shape index: {}]
  %s1 = inlined_call_operand.hbm [shape: f32[16,32], index: 1, kind: input, shape index: {}]
  %s2 = inlined_call_operand.vmem [shape: f32[1,32], index: 2, kind: input, shape index: {}]
  %s3 = inlined_call_operand.vmem [shape: f32[1,32], index: 3, kind: input, shape index: {}]
  %s4 = inlined_call_operand.vmem [shape: f32[3,1], index: 4, kind: input, shape index: {}]
  %s5 = inlined_call_operand.hbm [shape: f32[3,32], index: 5, kind: output, shape index: {0}]
  %s6 = inlined_call_operand.hbm [shape: f32[3,32], index: 6, kind: output, shape index: {1}]
  %7 = xla_tuple %s5, %s6
  %s8 = sld [smem:[#allocation0]]
  $region46: #{tpu_custom_call.1} parent=0
    _
  %s10 = ssub.s32 1, %s8
  %s11 = scalar_select 0, %s10, %s8
  %s13 = sshll.u32 %s0, 4
  %s14 = int_to_ptr.vmem [resolvable:$true] %s13
  %16 = dma.vmem_to_smem %s14, 16, [#allocation3], [#allocation2]
  %18 = dma.done [#allocation2], 16
  %19 = sfence
  $region1: #{tpu_custom_call.1} parent=0
    #allocation4 [shape = 'u8[8192]{0}', space=vmem, size = 0x2000, scoped, tag = 'input window, operand 1, single buffered']
    #allocation5 [shape = 's32[1]{0}', space=sflag, size = 0x4, scoped, tag = 'scoped memory for tpu_custom_call.1']
    #allocation6 [shape = 's32[1]{0}', space=sflag, size = 0x4, scoped, tag = 'scoped memory for tpu_custom_call.1']
    #allocation7 [shape = 'u8[2048]{0}', space=vmem, size = 0x800, scoped, tag = 'output window, operand 0, single buffered']
    #allocation8 [shape = 'u8[2048]{0}', space=vmem, size = 0x800, scoped, tag = 'output window, operand 1, single buffered']
    #allocation9 [shape = 's32[1]{0}', space=sflag, size = 0x4, scoped, tag = 'scoped memory for tpu_custom_call.1']
    %20 = vsyncpa [#allocation5], 0
    %21 = vsyncpa [#allocation6], 0
    %22 = vsyncpa [#allocation9], 0
    // Predicated region
    $region2: #{tpu_custom_call.1} parent=1 // pred_check
      _
    $region3: #{tpu_custom_call.1} parent=1 // pred_check_branch
      %24 = sbr.rel (0) target = $region5
    $region4: #{tpu_custom_call.1} parent=1 // pred_region
      %26 = vsyncadd [#allocation5], 0
      %s27 = sshll.u32 %s1, 4
      %s28 = int_to_ptr.hbm [resolvable:$true] %s27
      %s29 = sshll.u32 [#allocation4], 4
      %s30 = int_to_ptr.vmem [resolvable:$true] %s29
      %35 = dma.hbm_to_vmem [thread:$0]  %s28, 256, %s30, [#allocation5], 128, 128, 8
    $region5: #{tpu_custom_call.1} parent=1 // pred_fallthru
      _
    // Predicated region
    $region6: #{tpu_custom_call.1} parent=1 // pred_check
      _
    $region7: #{tpu_custom_call.1} parent=1 // pred_check_branch
      %37 = sbr.rel (0) target = $region9
    $region8: #{tpu_custom_call.1} parent=1 // pred_region
      _
    $region9: #{tpu_custom_call.1} parent=1 // pred_fallthru
      _
    // Predicated region
    $region10: #{tpu_custom_call.1} parent=1 // pred_check
      _
    $region11: #{tpu_custom_call.1} parent=1 // pred_check_branch
      %39 = sbr.rel (0) target = $region13
    $region12: #{tpu_custom_call.1} parent=1 // pred_region
      _
    $region13: #{tpu_custom_call.1} parent=1 // pred_fallthru
      _
    // Predicated region
    $region14: #{tpu_custom_call.1} parent=1 // pred_check
      _
    $region15: #{tpu_custom_call.1} parent=1 // pred_check_branch
      %41 = sbr.rel (0) target = $region17
    $region16: #{tpu_custom_call.1} parent=1 // pred_region
      _
    $region17: #{tpu_custom_call.1} parent=1 // pred_fallthru
      _
    // Predicated region
    $region18: #{tpu_custom_call.1} parent=1 // pred_check
      _
    $region19: #{tpu_custom_call.1} parent=1 // pred_check_branch
      %43 = sbr.rel (0) target = $region21
    $region20: #{tpu_custom_call.1} parent=1 // pred_region
      %45 = dma.done [#allocation5], 256
    $region21: #{tpu_custom_call.1} parent=1 // pred_fallthru
      _
    %p46 = scmp.eq.s32.totalorder 0, 0
    // Predicated region
    $region22: #{tpu_custom_call.1} parent=1 // pred_check
      %p47 = pneg %p46
    $region23: #{tpu_custom_call.1} parent=1 // pred_check_branch
      %49 = sbr.rel (%p47) target = $region25
    $region24: #{tpu_custom_call.1} parent=1 // pred_region
      %vm50 = vcmask 256000
      %51 = vst.msk [vmem:[#allocation7] sm:$0x7] %vm50, 0.0
      %52 = vst.msk [vmem:[#allocation8] sm:$0x7] %vm50, 0.0
    $region25: #{tpu_custom_call.1} parent=1 // pred_fallthru
      _
    %v53 = vld [vmem:[#allocation4] sm:$0xff]
    %v54 = vld [vmem:[#allocation4 + $0x8] sm:$0xff]
    %s55 = smul.u32 0, 16
    %v56 = vlaneseq
    %v57 = vshrl.u32 %v56, 7
    %v58 = vadd.s32 %v57, 8
    %v59 = vstv %s55
    %v60 = vadd.s32 %v59, %v57
    %v61 = vadd.s32 %v59, %v58
    %s62 = sld [smem:[#allocation3]]
    %v63 = vstv %s62
    %vm64 = vcmp.ge.s32.totalorder %v60, %v63
    %vm65 = vcmp.ge.s32.totalorder %v61, %v63
    %s66 = sld [smem:[#allocation3 + $0x1]]
    %v67 = vstv %s66
    %vm68 = vcmp.lt.s32.totalorder %v60, %v67
    %vm69 = vcmp.lt.s32.totalorder %v61, %v67
    %vm70 = vmand %vm64, %vm68
    %vm71 = vmand %vm65, %vm69
    %v72 = vsel %vm70, 1, 0
    %v73 = vsel %vm71, 1, 0
    %vm74 = vcmp.eq.s32.totalorder %v72, 1
    %vm75 = vcmp.eq.s32.totalorder %v73, 1
    %v76 = vsel %vm74, %v53, 0.0
    %v77 = vsel %vm75, %v54, 0.0
    %v78 = vld [vmem:[#allocation7] sm:$0x1]
    %vm79 = vcmask 261120
    %v80 = vsel %vm79, %v76, 0.0
    %v81 = vsel %vm79, %v77, 0.0
    %v82 = vadd.f32 %v80, %v81
    %v83 = vrot.slane %v82, 4
    %v84 = vadd.f32 %v82, %v83
    %v85 = vrot.slane %v84, 2
    %v86 = vadd.f32 %v84, %v85
    %v87 = vrot.slane %v86, 1
    %v88 = vadd.f32 %v86, %v87
    %v89 = vadd.f32 %v78, %v88
    %vm90 = vcmask 253952
    %91 = vst.msk [vmem:[#allocation7] sm:$0x1] %vm90, %v89
    %v92 = vld [vmem:[#allocation8] sm:$0x1]
    %v93 = vmul.f32 %v76, %v76
    %v94 = vmul.f32 %v77, %v77
    %v95 = vsel %vm79, %v93, 0.0
    %v96 = vsel %vm79, %v94, 0.0
    %v97 = vadd.f32 %v95, %v96
    %v98 = vrot.slane %v97, 4
    %v99 = vadd.f32 %v97, %v98
    %v100 = vrot.slane %v99, 2
    %v101 = vadd.f32 %v99, %v100
    %v102 = vrot.slane %v101, 1
    %v103 = vadd.f32 %v101, %v102
    %v104 = vadd.f32 %v92, %v103
    %105 = vst.msk [vmem:[#allocation8] sm:$0x1] %vm90, %v104
    %s106 = sld [smem:[#allocation3 + $0x1]]
    %v107 = vstv %s106
    %vm108 = vcmp.ge.s32.totalorder %v60, %v107
    %vm109 = vcmp.ge.s32.totalorder %v61, %v107
    %s110 = sld [smem:[#allocation3 + $0x2]]
    %v111 = vstv %s110
    %vm112 = vcmp.lt.s32.totalorder %v60, %v111
    %vm113 = vcmp.lt.s32.totalorder %v61, %v111
    %vm114 = vmand %vm108, %vm112
    %vm115 = vmand %vm109, %vm113
    %v116 = vsel %vm114, 1, 0
    %v117 = vsel %vm115, 1, 0
    %vm118 = vcmp.eq.s32.totalorder %v116, 1
    %vm119 = vcmp.eq.s32.totalorder %v117, 1
    %v120 = vsel %vm118, %v53, 0.0
    %v121 = vsel %vm119, %v54, 0.0
    %v122 = vld [vmem:[#allocation7 + $0x1] sm:$0x1]
    %v123 = vsel %vm79, %v120, 0.0
    %v124 = vsel %vm79, %v121, 0.0
    %v125 = vadd.f32 %v123, %v124
    %v126 = vrot.slane %v125, 4
    %v127 = vadd.f32 %v125, %v126
    %v128 = vrot.slane %v127, 2
    %v129 = vadd.f32 %v127, %v128
    %v130 = vrot.slane %v129, 1
    %v131 = vadd.f32 %v129, %v130
    %v132 = vadd.f32 %v122, %v131
    %133 = vst.msk [vmem:[#allocation7 + $0x1] sm:$0x1] %vm90, %v132
    %v134 = vld [vmem:[#allocation8 + $0x1] sm:$0x1]
    %v135 = vmul.f32 %v120, %v120
    %v136 = vmul.f32 %v121, %v121
    %v137 = vsel %vm79, %v135, 0.0
    %v138 = vsel %vm79, %v136, 0.0
    %v139 = vadd.f32 %v137, %v138
    %v140 = vrot.slane %v139, 4
    %v141 = vadd.f32 %v139, %v140
    %v142 = vrot.slane %v141, 2
    %v143 = vadd.f32 %v141, %v142
    %v144 = vrot.slane %v143, 1
    %v145 = vadd.f32 %v143, %v144
    %v146 = vadd.f32 %v134, %v145
    %147 = vst.msk [vmem:[#allocation8 + $0x1] sm:$0x1] %vm90, %v146
    %s148 = sld [smem:[#allocation3 + $0x2]]
    %v149 = vstv %s148
    %vm150 = vcmp.ge.s32.totalorder %v60, %v149
    %vm151 = vcmp.ge.s32.totalorder %v61, %v149
    %s152 = sld [smem:[#allocation3 + $0x3]]
    %v153 = vstv %s152
    %vm154 = vcmp.lt.s32.totalorder %v60, %v153
    %vm155 = vcmp.lt.s32.totalorder %v61, %v153
    %vm156 = vmand %vm150, %vm154
    %vm157 = vmand %vm151, %vm155
    %v158 = vsel %vm156, 1, 0
    %v159 = vsel %vm157, 1, 0
    %vm160 = vcmp.eq.s32.totalorder %v158, 1
    %vm161 = vcmp.eq.s32.totalorder %v159, 1
    %v162 = vsel %vm160, %v53, 0.0
    %v163 = vsel %vm161, %v54, 0.0
    %v164 = vld [vmem:[#allocation7 + $0x2] sm:$0x1]
    %v165 = vsel %vm79, %v162, 0.0
    %v166 = vsel %vm79, %v163, 0.0
    %v167 = vadd.f32 %v165, %v166
    %v168 = vrot.slane %v167, 4
    %v169 = vadd.f32 %v167, %v168
    %v170 = vrot.slane %v169, 2
    %v171 = vadd.f32 %v169, %v170
    %v172 = vrot.slane %v171, 1
    %v173 = vadd.f32 %v171, %v172
    %v174 = vadd.f32 %v164, %v173
    %175 = vst.msk [vmem:[#allocation7 + $0x2] sm:$0x1] %vm90, %v174
    %v176 = vld [vmem:[#allocation8 + $0x2] sm:$0x1]
    %v177 = vmul.f32 %v162, %v162
    %v178 = vmul.f32 %v163, %v163
    %v179 = vsel %vm79, %v177, 0.0
    %v180 = vsel %vm79, %v178, 0.0
    %v181 = vadd.f32 %v179, %v180
    %v182 = vrot.slane %v181, 4
    %v183 = vadd.f32 %v181, %v182
    %v184 = vrot.slane %v183, 2
    %v185 = vadd.f32 %v183, %v184
    %v186 = vrot.slane %v185, 1
    %v187 = vadd.f32 %v185, %v186
    %v188 = vadd.f32 %v176, %v187
    %189 = vst.msk [vmem:[#allocation8 + $0x2] sm:$0x1] %vm90, %v188
    // Predicated region
    $region26: #{tpu_custom_call.1} parent=1 // pred_check
      %p190 = pneg %p46
    $region27: #{tpu_custom_call.1} parent=1 // pred_check_branch
      %192 = sbr.rel (%p190) target = $region29
    $region28: #{tpu_custom_call.1} parent=1 // pred_region
      %v193 = vld [vmem:[%s4] sm:$0x7]
      %v194 = vld [vmem:[#allocation7] sm:$0x7]
      %v195 = vld [vmem:[#allocation8] sm:$0x7]
      %197 = vset.pattern.permute.xlu0 0
      %198 = vperm.xlu0 %197, %v193
      %v199 = vpop.permute.xlu0 %198
      %v201 = vrcp.pop %v199
      %v202 = vmul.f32 %v199, %v201
      %v203 = vsub.f32 1.0, %v202
      %v204 = vmul.f32 %v201, %v203
      %v205 = vadd.f32 %v201, %v204
      %vm206 = vweird.f32 %v199
      %vm207 = vweird.f32 %v201
      %vm208 = vmor %vm206, %vm207
      %v209 = vsel %vm208, %v201, %v205
      %v210 = vand.u32 2147483647, %v199
      %vm211 = vcmp.eq.f32.partialorder %v210, 8.507059e+37
      %v212 = vand.u32 %v199, 2147483648
      %v213 = vor.u32 1.1754944e-38, %v212
      %v214 = vsel %vm211, %v213, %v209
      %v215 = vmul.f32 %v194, %v214
      %v216 = vmul.f32 %v199, %v215
      %v217 = vmul.f32 %v216, %v215
      %v218 = vsub.f32 %v195, %v217
      %v219 = vsub.f32 %v193, 1.0
      %221 = vset.pattern.permute.xlu0 0
      %222 = vperm.xlu0 %221, %v219
      %v223 = vpop.permute.xlu0 %222
      %v225 = vrcp.pop %v223
      %v226 = vmul.f32 %v223, %v225
      %v227 = vsub.f32 1.0, %v226
      %v228 = vmul.f32 %v225, %v227
      %v229 = vadd.f32 %v225, %v228
      %vm230 = vweird.f32 %v223
      %vm231 = vweird.f32 %v225
      %vm232 = vmor %vm230, %vm231
      %v233 = vsel %vm232, %v225, %v229
      %v234 = vand.u32 2147483647, %v223
      %vm235 = vcmp.eq.f32.partialorder %v234, 8.507059e+37
      %v236 = vand.u32 %v223, 2147483648
      %v237 = vor.u32 1.1754944e-38, %v236
      %v238 = vsel %vm235, %v237, %v233
      %v239 = vmul.f32 %v218, %v238
      %v240 = vrsqrt.pop %v239
      %v241 = vmul.f32 %v240, %v239
      %v242 = vmul.f32 %v241, %v240
      %v243 = vmul.f32 0.5, %v242
      %v244 = vsub.f32 1.5, %v243
      %v245 = vmul.f32 %v240, %v244
      %v246 = vmul.f32 %v239, %v245
      %vm247 = vcmp.eq.f32.partialorder %v239, inf
      %v248 = vsel %vm247, %v239, %v246
      %vm249 = vcmp.eq.f32.partialorder %v239, 0.0
      %v250 = vand.u32 %v239, 2147483648
      %v251 = vsel %vm249, %v250, %v248
      %v252 = vadd.f32 %v251, 1e-05
      %v253 = vrcp.pop %v252
      %v254 = vmul.f32 %v252, %v253
      %v255 = vsub.f32 1.0, %v254
      %v256 = vmul.f32 %v253, %v255
      %v257 = vadd.f32 %v253, %v256
      %vm258 = vweird.f32 %v252
      %vm259 = vweird.f32 %v253
      %vm260 = vmor %vm258, %vm259
      %v261 = vsel %vm260, %v253, %v257
      %v262 = vand.u32 2147483647, %v252
      %vm263 = vcmp.eq.f32.partialorder %v262, 8.507059e+37
      %v264 = vand.u32 %v252, 2147483648
      %v265 = vor.u32 1.1754944e-38, %v264
      %v266 = vsel %vm263, %v265, %v261
      %v267 = vld [vmem:[%s2] sm:$0x1]
      %v269 = vperm.slane %v267, 0
      %v271 = vmul.f32 %v269, %v266
      %vm272 = vcmask 256000
      %273 = vst.msk [vmem:[#allocation7] sm:$0x7] %vm272, %v271
      %v274 = vld [vmem:[%s3] sm:$0x1]
      %v275 = vmul.f32 %v215, %v271
      %v277 = vperm.slane %v274, 0
      %v279 = vsub.f32 %v277, %v275
      %280 = vst.msk [vmem:[#allocation8] sm:$0x7] %vm272, %v279
    $region29: #{tpu_custom_call.1} parent=1 // pred_fallthru
      _
    // Predicated region
    $region30: #{tpu_custom_call.1} parent=1 // pred_check
      _
    $region31: #{tpu_custom_call.1} parent=1 // pred_check_branch
      %282 = sbr.rel (0) target = $region33
    $region32: #{tpu_custom_call.1} parent=1 // pred_region
      %284 = vsyncadd [#allocation6], 0
      %s286 = sshll.u32 [#allocation7], 4
      %s287 = int_to_ptr.vmem [resolvable:$true] %s286
      %s288 = sshll.u32 %s5, 4
      %s289 = int_to_ptr.hbm [resolvable:$true] %s288
      %291 = dma.vmem_to_hbm [thread:$0]  %s287, 64, %s289, [#allocation6]
    $region33: #{tpu_custom_call.1} parent=1 // pred_fallthru
      _
    // Predicated region
    $region34: #{tpu_custom_call.1} parent=1 // pred_check
      _
    $region35: #{tpu_custom_call.1} parent=1 // pred_check_branch
      %293 = sbr.rel (0) target = $region37
    $region36: #{tpu_custom_call.1} parent=1 // pred_region
      %295 = vsyncadd [#allocation9], 0
      %s297 = sshll.u32 [#allocation8], 4
      %s298 = int_to_ptr.vmem [resolvable:$true] %s297
      %s299 = sshll.u32 %s6, 4
      %s300 = int_to_ptr.hbm [resolvable:$true] %s299
      %302 = dma.vmem_to_hbm [thread:$0]  %s298, 64, %s300, [#allocation9]
    $region37: #{tpu_custom_call.1} parent=1 // pred_fallthru
      _
    // Predicated region
    $region38: #{tpu_custom_call.1} parent=1 // pred_check
      _
    $region39: #{tpu_custom_call.1} parent=1 // pred_check_branch
      %304 = sbr.rel (0) target = $region41
    $region40: #{tpu_custom_call.1} parent=1 // pred_region
      %306 = dma.done [#allocation6], 64
    $region41: #{tpu_custom_call.1} parent=1 // pred_fallthru
      _
    // Predicated region
    $region42: #{tpu_custom_call.1} parent=1 // pred_check
      _
    $region43: #{tpu_custom_call.1} parent=1 // pred_check_branch
      %308 = sbr.rel (0) target = $region45
    $region44: #{tpu_custom_call.1} parent=1 // pred_region
      %310 = dma.done [#allocation9], 64
    $region45: #{tpu_custom_call.1} parent=1 // pred_fallthru
      _
    %311 = vsyncpa [#allocation5], 1
    %312 = vsyncpa [#allocation6], 1
    %313 = vsyncpa [#allocation9], 1

</llo_original>
